<compile_context>
chip_gen: v7x
topology: tpu7x:2x2x1
jax: 0.10.0
libtpu: 0.0.40
codegen_flags: <defaults>
</compile_context>

<pallas_src>
import functools

import jax
import jax.numpy as jnp
from jax.experimental import pallas as pl
from jax.experimental.pallas import tpu as pltpu


BN_EPS = 1e-5


# ----------------------------------------------------------------------------- kernel

def _conv1d_bn_relu_kernel(x_ref, w_ref, b_ref, o_ref, *, K, pad):
    """Bb batch elements: 1-D conv (K-step roll+matmul accumulation) + bias + ReLU.

    x_ref: (Bb, Cin, Lin)      NCL input block (PyTorch layout, no transposes)
    w_ref: (K, Cout, Cin)      BN scale folded in; w_ref[k] is the tap-k weight
    b_ref: (Cout, 1)           conv bias + BN shift, folded
    o_ref: (Bb, Cout, Lout)    Lout = Lin + 2*pad - K + 1
    """
    Bb, Cin, Lin = x_ref.shape
    Lout = o_ref.shape[2]
    # Working width: conv zero-padding plus round-up to a multiple of 128 so
    # lane rolls, matmul N dim and intermediate values stay lane-dense.
    Lw = ((Lin + 2 * pad + 127) // 128) * 128
    hi = Lw - Lin - pad                      # trailing zero columns

    bias = b_ref[...]                        # (Cout, 1), broadcasts over lanes

    for i in range(Bb):                      # static unroll; Bb is small
        xi = x_ref[i].astype(jnp.float32)    # (Cin, Lin), channels-first
        if pad or hi:
            parts = []
            if pad:
                parts.append(jnp.zeros((Cin, pad), jnp.float32))
            parts.append(xi)
            if hi:
                parts.append(jnp.zeros((Cin, hi), jnp.float32))
            xw = jnp.concatenate(parts, axis=1)          # (Cin, Lw)
        else:
            xw = xi

        # Tap 0 (no shift), then taps 1..K-1 via lane rotation:
        #   shifted[:, t] = xw[:, t + k]  for the rows/columns we keep.
        acc = jnp.dot(w_ref[0], xw, preferred_element_type=jnp.float32)
        for k in range(1, K):
            shifted = pltpu.roll(xw, Lw - k, axis=1)     # XLU, overlaps MXU
            acc = acc + jnp.dot(w_ref[k], shifted,
                                preferred_element_type=jnp.float32)

        y = jnp.maximum(acc + bias, 0.0)                 # (Cout, Lw)
        # Columns >= Lout are padding garbage; never stored.
        o_ref[i] = y[:, :Lout].astype(o_ref.dtype)


# ----------------------------------------------------------------------------- wrapper

def fold_conv_bn(conv_w, conv_b, gamma, beta, mean, var, eps=BN_EPS):
    """Fold inference BatchNorm1d into the Conv1d weight/bias.  Call ONCE,
    outside the jitted forward path.

    conv_w: (Cout, Cin, K) PyTorch layout.
    Returns: w_folded (K, Cout, Cin), b_folded (Cout, 1).
    """
    Cout, Cin, K = conv_w.shape
    s = gamma / jnp.sqrt(var + eps)                         # (Cout,)
    # (Cout, Cin, K) -> (K, Cout, Cin), scale per out-channel.
    w = jnp.transpose(conv_w, (2, 0, 1)) * s[None, :, None]
    b = (s * (conv_b - mean) + beta).reshape(Cout, 1)
    return w.astype(jnp.float32), b.astype(jnp.float32)


def _pick_block_b(B):
    """Largest batch block that still leaves >=2 parallel grid steps (v7x has
    two TensorCores); a single fat step would idle one of them."""
    if B <= 1:
        return 1
    for bb in range(B // 2, 0, -1):
        if B % bb == 0:
            return bb
    return 1


def basic_conv1d_forward(x_ncl, w_folded, b_folded, *, kernel_size, padding=0,
                         block_b=None):
    """BasicConv1d forward: x (B, Cin, L) -> (B, Cout, Lout), PyTorch layout."""
    K = kernel_size
    Kw, Cout, Cin_w = w_folded.shape
    B, Cin, Lin = x_ncl.shape
    assert (Kw, Cin_w) == (K, Cin), (w_folded.shape, K, Cin)
    Lout = Lin + 2 * padding - K + 1
    assert Lout > 0, "kernel_size larger than (padded) input length"

    Bb = _pick_block_b(B) if block_b is None else block_b
    assert B % Bb == 0, (B, Bb)

    return pl.pallas_call(
        functools.partial(_conv1d_bn_relu_kernel, K=K, pad=padding),
        out_shape=jax.ShapeDtypeStruct((B, Cout, Lout), jnp.float32),
        grid=(B // Bb,),
        in_specs=[
            pl.BlockSpec((Bb, Cin, Lin), lambda b: (b, 0, 0)),
            pl.BlockSpec((K, Cout, Cin), lambda b: (0, 0, 0)),
            pl.BlockSpec((Cout, 1), lambda b: (0, 0)),
        ],
        out_specs=pl.BlockSpec((Bb, Cout, Lout), lambda b: (b, 0, 0)),
        compiler_params=pltpu.CompilerParams(
            dimension_semantics=("parallel",)),
    )(x_ncl, w_folded, b_folded)


# ----------------------------------------------------------------------------- reference

def _reference(x_ncl, conv_w, conv_b, gamma, beta, mean, var, eps=BN_EPS,
               padding=0):
    """Pure-JAX reference of Conv1d + BatchNorm1d(eval) + ReLU."""
    y = jax.lax.conv_general_dilated(
        x_ncl, conv_w, window_strides=(1,), padding=[(padding, padding)],
        dimension_numbers=("NCH", "OIH", "NCH"))
    y = y + conv_b[None, :, None]
    s = gamma / jnp.sqrt(var + eps)
    y = s[None, :, None] * (y - mean[None, :, None]) + beta[None, :, None]
    return jnp.maximum(y, 0.0)


# ----------------------------------------------------------------------------- main

if __name__ == "__main__":
    B, Cin, Cout, L, K = 2, 64, 128, 64, 3   # small shapes; Cout=128 lane-dense

    key = jax.random.PRNGKey(0)
    ks = jax.random.split(key, 7)
    x = jax.random.normal(ks[0], (B, Cin, L), jnp.float32)
    conv_w = jax.random.normal(ks[1], (Cout, Cin, K), jnp.float32) * 0.05
    conv_b = jax.random.normal(ks[2], (Cout,), jnp.float32) * 0.1
    gamma = 1.0 + 0.1 * jax.random.normal(ks[3], (Cout,), jnp.float32)
    beta = 0.1 * jax.random.normal(ks[4], (Cout,), jnp.float32)
    mean = 0.1 * jax.random.normal(ks[5], (Cout,), jnp.float32)
    var = 1.0 + jnp.abs(0.1 * jax.random.normal(ks[6], (Cout,), jnp.float32))

    # Parameter prep (layout transform + BN fold) happens once, outside jit.
    w_f, b_f = fold_conv_bn(conv_w, conv_b, gamma, beta, mean, var)

    # Validate both the padding=0 and padding>0 paths (review concern).
    for pad in (0, 1):
        fwd = jax.jit(functools.partial(basic_conv1d_forward,
                                        kernel_size=K, padding=pad))
        out = jax.block_until_ready(fwd(x, w_f, b_f))
        ref = _reference(x, conv_w, conv_b, gamma, beta, mean, var, padding=pad)

        Lout = L + 2 * pad - K + 1
        assert out.shape == (B, Cout, Lout), out.shape
        assert bool(jnp.all(jnp.isfinite(out)))
        assert bool(jnp.allclose(out, ref, rtol=1e-4, atol=1e-4)), \
            (pad, float(jnp.max(jnp.abs(out - ref))))

    print("KERNEL_OK")
</pallas_src>

<mosaic_0001>
module attributes {stable_mosaic.version = 11 : i64} {
  func.func @_conv1d_bn_relu_kernel(%arg0: i32, %arg1: memref<1x64x64xf32, #tpu.memory_space<vmem>>, %arg2: memref<3x128x64xf32, #tpu.memory_space<vmem>>, %arg3: memref<128x1xf32, #tpu.memory_space<vmem>>, %arg4: memref<1x128x62xf32, #tpu.memory_space<vmem>>) attributes {dimension_semantics = [#tpu.dimension_semantics<parallel>], iteration_bounds = array<i64: 2>, scalar_prefetch = 0 : i64, scratch_operands = 0 : i64, tpu.core_type = #tpu.core_type<tc>, window_params = [{transform_indices = @transform_0, window_bounds = array<i64: 1, 64, 64>}, {pipeline_mode = #tpu.pipeline_mode<synchronous>, transform_indices = @transform_1, window_bounds = array<i64: 3, 128, 64>}, {pipeline_mode = #tpu.pipeline_mode<synchronous>, transform_indices = @transform_2, window_bounds = array<i64: 128, 1>}, {transform_indices = @transform_3, window_bounds = array<i64: 1, 128, 62>}]} {
    %c0 = arith.constant 0 : index
    %c0_0 = arith.constant 0 : index
    %0 = vector.load %arg3[%c0, %c0_0] : memref<128x1xf32, #tpu.memory_space<vmem>>, vector<128x1xf32>
    %c0_1 = arith.constant 0 : index
    %c0_2 = arith.constant 0 : index
    %c0_3 = arith.constant 0 : index
    %1 = vector.load %arg1[%c0_1, %c0_2, %c0_3] : memref<1x64x64xf32, #tpu.memory_space<vmem>>, vector<1x64x64xf32>
    %2 = vector.shape_cast %1 : vector<1x64x64xf32> to vector<64x64xf32>
    %cst = arith.constant 0.000000e+00 : f32
    %3 = vector.broadcast %cst : f32 to vector<64x64xf32>
    %4 = tpu.concatenate %2, %3 in 1 : vector<64x64xf32>, vector<64x64xf32> -> vector<64x128xf32>
    %c0_4 = arith.constant 0 : index
    %c0_5 = arith.constant 0 : index
    %c0_6 = arith.constant 0 : index
    %5 = vector.load %arg2[%c0_4, %c0_5, %c0_6] : memref<3x128x64xf32, #tpu.memory_space<vmem>>, vector<1x128x64xf32>
    %6 = vector.shape_cast %5 : vector<1x128x64xf32> to vector<128x64xf32>
    %cst_7 = arith.constant dense<0.000000e+00> : vector<128x128xf32>
    %7 = tpu.matmul %6, %4, %cst_7 {dimension_numbers = #tpu.dot_dimension_numbers<[1], [0], [0], [1], [0, 0, 1, 1], [], []>} : vector<128x64xf32>, vector<64x128xf32>, vector<128x128xf32> -> vector<128x128xf32>
    %c127_i32 = arith.constant 127 : i32
    %8 = tpu.dynamic_rotate %4 by %c127_i32 dim 1 : vector<64x128xf32>, i32 -> vector<64x128xf32>
    %c1 = arith.constant 1 : index
    %c0_8 = arith.constant 0 : index
    %c0_9 = arith.constant 0 : index
    %9 = vector.load %arg2[%c1, %c0_8, %c0_9] : memref<3x128x64xf32, #tpu.memory_space<vmem>>, vector<1x128x64xf32>
    %10 = vector.shape_cast %9 : vector<1x128x64xf32> to vector<128x64xf32>
    %cst_10 = arith.constant dense<0.000000e+00> : vector<128x128xf32>
    %11 = tpu.matmul %10, %8, %cst_10 {dimension_numbers = #tpu.dot_dimension_numbers<[1], [0], [0], [1], [0, 0, 1, 1], [], []>} : vector<128x64xf32>, vector<64x128xf32>, vector<128x128xf32> -> vector<128x128xf32>
    %12 = arith.addf %7, %11 : vector<128x128xf32>
    %c126_i32 = arith.constant 126 : i32
    %13 = tpu.dynamic_rotate %4 by %c126_i32 dim 1 : vector<64x128xf32>, i32 -> vector<64x128xf32>
    %c2 = arith.constant 2 : index
    %c0_11 = arith.constant 0 : index
    %c0_12 = arith.constant 0 : index
    %14 = vector.load %arg2[%c2, %c0_11, %c0_12] : memref<3x128x64xf32, #tpu.memory_space<vmem>>, vector<1x128x64xf32>
    %15 = vector.shape_cast %14 : vector<1x128x64xf32> to vector<128x64xf32>
    %cst_13 = arith.constant dense<0.000000e+00> : vector<128x128xf32>
    %16 = tpu.matmul %15, %13, %cst_13 {dimension_numbers = #tpu.dot_dimension_numbers<[1], [0], [0], [1], [0, 0, 1, 1], [], []>} : vector<128x64xf32>, vector<64x128xf32>, vector<128x128xf32> -> vector<128x128xf32>
    %17 = arith.addf %12, %16 : vector<128x128xf32>
    %18 = vector.broadcast %0 : vector<128x1xf32> to vector<128x128xf32>
    %19 = arith.addf %17, %18 : vector<128x128xf32>
    %cst_14 = arith.constant 0.000000e+00 : f32
    %20 = vector.broadcast %cst_14 : f32 to vector<128x128xf32>
    %21 = arith.maximumf %19, %20 : vector<128x128xf32>
    %22 = vector.extract_strided_slice %21 {offsets = [0, 0], sizes = [128, 62], strides = [1, 1]} : vector<128x128xf32> to vector<128x62xf32>
    %c0_15 = arith.constant 0 : index
    %c0_16 = arith.constant 0 : index
    %c0_17 = arith.constant 0 : index
    %23 = vector.load %arg4[%c0_15, %c0_16, %c0_17] : memref<1x128x62xf32, #tpu.memory_space<vmem>>, vector<1x128x62xf32>
    %24 = vector.shape_cast %23 : vector<1x128x62xf32> to vector<128x62xf32>
    %25 = vector.shape_cast %22 : vector<128x62xf32> to vector<1x128x62xf32>
    tpu.vector_store %arg4[%c0_15, %c0_16, %c0_17], %25 {strides = array<i32>} : memref<1x128x62xf32, #tpu.memory_space<vmem>>, vector<1x128x62xf32>,
    return
  }
  func.func @transform_0(%arg0: i32) -> (i32, i32, i32) {
    %c0_i32 = arith.constant 0 : i32
    %c0_i32_0 = arith.constant 0 : i32
    %c0_i32_1 = arith.constant 0 : i32
    return %arg0, %c0_i32, %c0_i32_0 : i32, i32, i32
  }
  func.func @transform_1(%arg0: i32) -> (i32, i32, i32) {
    %c0_i32 = arith.constant 0 : i32
    %c0_i32_0 = arith.constant 0 : i32
    %c0_i32_1 = arith.constant 0 : i32
    %c0_i32_2 = arith.constant 0 : i32
    return %c0_i32, %c0_i32_0, %c0_i32_1 : i32, i32, i32
  }
  func.func @transform_2(%arg0: i32) -> (i32, i32) {
    %c0_i32 = arith.constant 0 : i32
    %c0_i32_0 = arith.constant 0 : i32
    %c0_i32_1 = arith.constant 0 : i32
    return %c0_i32, %c0_i32_0 : i32, i32
  }
  func.func @transform_3(%arg0: i32) -> (i32, i32, i32) {
    %c0_i32 = arith.constant 0 : i32
    %c0_i32_0 = arith.constant 0 : i32
    %c0_i32_1 = arith.constant 0 : i32
    return %arg0, %c0_i32, %c0_i32_0 : i32, i32, i32
  }
}

</mosaic_0001>

<llo_original>
// kernel: basic_conv1d_forward.1
$region0: #{basic_conv1d_forward.1}
  #allocation0 [shape = 'u32[]', space=smem, size = 0x4, offset = 0x4, fixed_abs, tag = 'smem constant byte address 0x4 - core index']
  #allocation1 [shape = 'u32[144,128]{1,0:T(1,128)}', space=vmem, size = 0x12000, scoped, tag = 'internal scratch']
  %s0 = inlined_call_operand.vmem [shape: f32[2,64,64], index: 0, kind: input, shape index: {}]
  %s1 = inlined_call_operand.vmem [shape: f32[3,128,64], index: 1, kind: input, shape index: {}]
  %s2 = inlined_call_operand.vmem [shape: f32[128,1], index: 2, kind: input, shape index: {}]
  %s3 = inlined_call_operand.vmem [shape: f32[2,128,62], index: 3, kind: output, shape index: {}]
  %s4 = sld [smem:[#allocation0]]
  $region45: #{basic_conv1d_forward.1} parent=0
    _
  %s6 = ssub.s32 1, %s4
  %s7 = scalar_select 0, %s6, %s4
  loop: start=0, step=1, limit=4
  $region2: #{basic_conv1d_forward.1} parent=0 // loop_pre_header
    _
  $region3: #{basic_conv1d_forward.1} parent=0 // loop_header
    %s9 = sphi 0, %s13
    %p10 = scmp.ge.s32.totalorder %s9, 4
    %s19 = sphi 0, %s21
    %s22 = sphi 0, %s19
    %s23 = sphi 0, %s22
    %s39 = sphi 0, %s23
    %s43 = sphi 0, %s43
    %s45 = sphi 0, %s43
    %s46 = sphi 0, %s45
    %s60 = sphi 0, %s46
    %s64 = sphi 0, %s64
    %s66 = sphi 0, %s64
    %s67 = sphi 0, %s66
    %s81 = sphi 0, %s67
    %s87 = sphi 0, %s89
    %s90 = sphi 0, %s87
    %s91 = sphi 0, %s90
    %s107 = sphi 0, %s91
  $region4: #{basic_conv1d_forward.1} parent=0 // loop_header_branch
    %12 = sbr.rel (%p10) target = $region8
  $region5: #{basic_conv1d_forward.1} parent=0 // loop_body
    %s14 = ssub.s32 %s9, 1
    %s15 = ssub.s32 %s9, 2
    %s16 = sadd.s32 %s9, 1
    %s17 = ssub.s32 %s9, %s16
    %p18 = scmp.eq.s32.totalorder %s17, 0
    %s20 = sadd.s32 %s19, 1
    %s21 = scalar_select %p18, %s19, %s20
    %p24 = pneg %p18
    %p25 = scmp.eq.s32.totalorder %s9, 1
    %p26 = por %p24, %p25
    %p27 = scmp.ne.s32.totalorder %s19, %s22
    %p28 = scmp.eq.s32.totalorder %s9, 0
    %p29 = por %p27, %p28
    %p30 = scmp.ne.s32.totalorder %s19, %s22
    %p31 = scmp.eq.s32.totalorder %s14, 1
    %p32 = por %p30, %p31
    %p33 = scmp.ne.s32.totalorder %s22, %s23
    %p34 = scmp.eq.s32.totalorder %s14, 0
    %p35 = por %p33, %p34
    %p36 = scmp.ne.s32.totalorder %s22, %s23
    %p37 = scmp.eq.s32.totalorder %s15, 1
    %p38 = por %p36, %p37
    %p40 = scmp.ne.s32.totalorder %s23, %s39
    %p41 = scmp.eq.s32.totalorder %s15, 0
    %p42 = por %p40, %p41
    %s44 = sadd.s32 %s43, 1
    %p47 = scmp.eq.s32.totalorder %s9, 1
    %p48 = scmp.ne.s32.totalorder %s43, %s45
    %p49 = scmp.eq.s32.totalorder %s9, 0
    %p50 = por %p48, %p49
    %p51 = scmp.ne.s32.totalorder %s43, %s45
    %p52 = scmp.eq.s32.totalorder %s14, 1
    %p53 = por %p51, %p52
    %p54 = scmp.ne.s32.totalorder %s45, %s46
    %p55 = scmp.eq.s32.totalorder %s14, 0
    %p56 = por %p54, %p55
    %p57 = scmp.ne.s32.totalorder %s45, %s46
    %p58 = scmp.eq.s32.totalorder %s15, 1
    %p59 = por %p57, %p58
    %p61 = scmp.ne.s32.totalorder %s46, %s60
    %p62 = scmp.eq.s32.totalorder %s15, 0
    %p63 = por %p61, %p62
    %s65 = sadd.s32 %s64, 1
    %p68 = scmp.eq.s32.totalorder %s9, 1
    %p69 = scmp.ne.s32.totalorder %s64, %s66
    %p70 = scmp.eq.s32.totalorder %s9, 0
    %p71 = por %p69, %p70
    %p72 = scmp.ne.s32.totalorder %s64, %s66
    %p73 = scmp.eq.s32.totalorder %s14, 1
    %p74 = por %p72, %p73
    %p75 = scmp.ne.s32.totalorder %s66, %s67
    %p76 = scmp.eq.s32.totalorder %s14, 0
    %p77 = por %p75, %p76
    %p78 = scmp.ne.s32.totalorder %s66, %s67
    %p79 = scmp.eq.s32.totalorder %s15, 1
    %p80 = por %p78, %p79
    %p82 = scmp.ne.s32.totalorder %s67, %s81
    %p83 = scmp.eq.s32.totalorder %s15, 0
    %p84 = por %p82, %p83
    %s85 = ssub.s32 %s9, %s16
    %p86 = scmp.eq.s32.totalorder %s85, 0
    %s88 = sadd.s32 %s87, 1
    %s89 = scalar_select %p86, %s87, %s88
    %p92 = pneg %p86
    %p93 = scmp.eq.s32.totalorder %s9, 1
    %p94 = por %p92, %p93
    %p95 = scmp.ne.s32.totalorder %s87, %s90
    %p96 = scmp.eq.s32.totalorder %s9, 0
    %p97 = por %p95, %p96
    %p98 = scmp.ne.s32.totalorder %s87, %s90
    %p99 = scmp.eq.s32.totalorder %s14, 1
    %p100 = por %p98, %p99
    %p101 = scmp.ne.s32.totalorder %s90, %s91
    %p102 = scmp.eq.s32.totalorder %s14, 0
    %p103 = por %p101, %p102
    %p104 = scmp.ne.s32.totalorder %s90, %s91
    %p105 = scmp.eq.s32.totalorder %s15, 1
    %p106 = por %p104, %p105
    %p108 = scmp.ne.s32.totalorder %s91, %s107
    %p109 = scmp.eq.s32.totalorder %s15, 0
    %p110 = por %p108, %p109
    %p111 = scmp.le.s32.totalorder 1, %s9
    %p112 = scmp.lt.s32.totalorder %s9, 3
    %p113 = pnand %p111, %p112
    %p114 = pneg %p113
    // Predicated region
    $region9: #{basic_conv1d_forward.1} parent=5 // pred_check
      _
    $region10: #{basic_conv1d_forward.1} parent=5 // pred_check_branch
      %116 = sbr.rel (%p113) target = $region12
    $region11: #{basic_conv1d_forward.1} parent=5 // pred_region
      %s117 = ssub.s32 %s9, 1
      // Predicated region
      $region13: #{basic_conv1d_forward.1} parent=11 // pred_check
        %p118 = pneg %p56
      $region14: #{basic_conv1d_forward.1} parent=11 // pred_check_branch
        %120 = sbr.rel (%p118) target = $region16
      $region15: #{basic_conv1d_forward.1} parent=11 // pred_region
        _
      $region16: #{basic_conv1d_forward.1} parent=11 // pred_fallthru
        _
      // Predicated region
      $region17: #{basic_conv1d_forward.1} parent=11 // pred_check
        %p121 = pneg %p77
      $region18: #{basic_conv1d_forward.1} parent=11 // pred_check_branch
        %123 = sbr.rel (%p121) target = $region20
      $region19: #{basic_conv1d_forward.1} parent=11 // pred_region
        _
      $region20: #{basic_conv1d_forward.1} parent=11 // pred_fallthru
        _
    $region12: #{basic_conv1d_forward.1} parent=5 // pred_fallthru
      _
    %p124 = scmp.lt.s32.totalorder %s9, 2
    // Predicated region
    $region21: #{basic_conv1d_forward.1} parent=5 // pred_check
      %p125 = pneg %p124
    $region22: #{basic_conv1d_forward.1} parent=5 // pred_check_branch
      %127 = sbr.rel (%p125) target = $region24
    $region23: #{basic_conv1d_forward.1} parent=5 // pred_region
      // Predicated region
      $region25: #{basic_conv1d_forward.1} parent=23 // pred_check
        %p128 = pneg %p29
      $region26: #{basic_conv1d_forward.1} parent=23 // pred_check_branch
        %130 = sbr.rel (%p128) target = $region28
      $region27: #{basic_conv1d_forward.1} parent=23 // pred_region
        %p131 = scmp.lt.s32.totalorder %s9, 1
        %s132 = scalar_select %p131, %s9, 1
        %s133 = smul.addr %s132, 8
        %s134 = smul.addr %s133, 8
        %s135 = scalar_lea.vmem %s0, %s134
      $region28: #{basic_conv1d_forward.1} parent=23 // pred_fallthru
        _
    $region24: #{basic_conv1d_forward.1} parent=5 // pred_fallthru
      _
    %p136 = scmp.le.s32.totalorder 1, %s9
    %p137 = scmp.lt.s32.totalorder %s9, 3
    %p138 = pnand %p136, %p137
    %p139 = pneg %p138
    // Predicated region
    $region29: #{basic_conv1d_forward.1} parent=5 // pred_check
      _
    $region30: #{basic_conv1d_forward.1} parent=5 // pred_check_branch
      %141 = sbr.rel (%p138) target = $region32
    $region31: #{basic_conv1d_forward.1} parent=5 // pred_region
      %s142 = ssub.s32 %s9, 1
      %p143 = scmp.lt.s32.totalorder %s14, 1
      %s144 = scalar_select %p143, %s14, 1
      %s145 = smul.addr %s144, 8
      %s146 = smul.addr %s145, 8
      %s147 = scalar_lea.vmem %s0, %s146
      %p148 = pneg %p35
      %p149 = pneg %p32
      %p150 = pneg %p56
      %p151 = pneg %p53
      %p152 = pneg %p77
      %p153 = pneg %p74
      %p154 = pneg %p103
      %p155 = pneg %p100
      %p156 = scmp.lt.s32.totalorder %s14, 1
      %s157 = scalar_select %p156, %s14, 1
      %s158 = smul.addr %s157, 16
      %s159 = smul.addr %s158, 8
      %s160 = scalar_lea.vmem %s3, %s159
      %p161 = scmp.lt.s32.totalorder %s14, 1
      %s162 = scalar_select %p161, %s14, 1
      %s163 = smul.addr %s162, 8
      %s164 = smul.addr %s163, 8
      %s165 = scalar_lea.vmem %s0, %s164
      %p166 = scmp.lt.s32.totalorder %s14, 1
      %s167 = scalar_select %p166, %s14, 1
      %s168 = smul.addr %s167, 16
      %s169 = smul.addr %s168, 8
      %s170 = scalar_lea.vmem %s3, %s169
      %v171 = vld [vmem:[%s2] sm:$0xff]
      %v172 = vld [vmem:[%s2 + $0x8] sm:$0xff]
      %v173 = vld [vmem:[%s2 + $0x10] sm:$0xff]
      %v174 = vld [vmem:[%s2 + $0x18] sm:$0xff]
      %v175 = vld [vmem:[%s2 + $0x20] sm:$0xff]
      %v176 = vld [vmem:[%s2 + $0x28] sm:$0xff]
      %v177 = vld [vmem:[%s2 + $0x30] sm:$0xff]
      %v178 = vld [vmem:[%s2 + $0x38] sm:$0xff]
      %v179 = vld [vmem:[%s2 + $0x40] sm:$0xff]
      %v180 = vld [vmem:[%s2 + $0x48] sm:$0xff]
      %v181 = vld [vmem:[%s2 + $0x50] sm:$0xff]
      %v182 = vld [vmem:[%s2 + $0x58] sm:$0xff]
      %v183 = vld [vmem:[%s2 + $0x60] sm:$0xff]
      %v184 = vld [vmem:[%s2 + $0x68] sm:$0xff]
      %v185 = vld [vmem:[%s2 + $0x70] sm:$0xff]
      %v186 = vld [vmem:[%s2 + $0x78] sm:$0xff]
      %v187 = vld [vmem:[%s165] sm:$0xff]
      %v188 = vld [vmem:[%s165 + $0x8] sm:$0xff]
      %v189 = vld [vmem:[%s165 + $0x10] sm:$0xff]
      %v190 = vld [vmem:[%s165 + $0x18] sm:$0xff]
      %v191 = vld [vmem:[%s165 + $0x20] sm:$0xff]
      %v192 = vld [vmem:[%s165 + $0x28] sm:$0xff]
      %v193 = vld [vmem:[%s165 + $0x30] sm:$0xff]
      %v194 = vld [vmem:[%s165 + $0x38] sm:$0xff]
      %vm195 = vcmask 523264
      %v196 = vsel %vm195, %v187, 0.0
      %v197 = vsel %vm195, %v188, 0.0
      %v198 = vsel %vm195, %v189, 0.0
      %v199 = vsel %vm195, %v190, 0.0
      %v200 = vsel %vm195, %v191, 0.0
      %v201 = vsel %vm195, %v192, 0.0
      %v202 = vsel %vm195, %v193, 0.0
      %v203 = vsel %vm195, %v194, 0.0
      %v204 = vld [vmem:[%s1] sm:$0xff]
      %v205 = vld [vmem:[%s1 + $0x8] sm:$0xff]
      %v206 = vld [vmem:[%s1 + $0x10] sm:$0xff]
      %v207 = vld [vmem:[%s1 + $0x18] sm:$0xff]
      %v208 = vld [vmem:[%s1 + $0x20] sm:$0xff]
      %v209 = vld [vmem:[%s1 + $0x28] sm:$0xff]
      %v210 = vld [vmem:[%s1 + $0x30] sm:$0xff]
      %v211 = vld [vmem:[%s1 + $0x38] sm:$0xff]
      %v212 = vld [vmem:[%s1 + $0x40] sm:$0xff]
      %v213 = vld [vmem:[%s1 + $0x48] sm:$0xff]
      %v214 = vld [vmem:[%s1 + $0x50] sm:$0xff]
      %v215 = vld [vmem:[%s1 + $0x58] sm:$0xff]
      %v216 = vld [vmem:[%s1 + $0x60] sm:$0xff]
      %v217 = vld [vmem:[%s1 + $0x68] sm:$0xff]
      %v218 = vld [vmem:[%s1 + $0x70] sm:$0xff]
      %v219 = vld [vmem:[%s1 + $0x78] sm:$0xff]
      %220 = vrot.lane.b32.xlu0 %v196, 127
      %v221 = vpop.permute.xlu0 %220
      %222 = vrot.lane.b32.xlu0 %v197, 127
      %v223 = vpop.permute.xlu0 %222
      %224 = vrot.lane.b32.xlu0 %v198, 127
      %v225 = vpop.permute.xlu0 %224
      %226 = vrot.lane.b32.xlu0 %v199, 127
      %v227 = vpop.permute.xlu0 %226
      %228 = vrot.lane.b32.xlu0 %v200, 127
      %v229 = vpop.permute.xlu0 %228
      %230 = vrot.lane.b32.xlu0 %v201, 127
      %v231 = vpop.permute.xlu0 %230
      %232 = vrot.lane.b32.xlu0 %v202, 127
      %v233 = vpop.permute.xlu0 %232
      %234 = vrot.lane.b32.xlu0 %v203, 127
      %v235 = vpop.permute.xlu0 %234
      %s236 = scalar_lea.vmem %s1, 128
      %v237 = vld [vmem:[%s236] sm:$0xff]
      %v238 = vld [vmem:[%s236 + $0x8] sm:$0xff]
      %v239 = vld [vmem:[%s236 + $0x10] sm:$0xff]
      %v240 = vld [vmem:[%s236 + $0x18] sm:$0xff]
      %v241 = vld [vmem:[%s236 + $0x20] sm:$0xff]
      %v242 = vld [vmem:[%s236 + $0x28] sm:$0xff]
      %v243 = vld [vmem:[%s236 + $0x30] sm:$0xff]
      %v244 = vld [vmem:[%s236 + $0x38] sm:$0xff]
      %v245 = vld [vmem:[%s236 + $0x40] sm:$0xff]
      %v246 = vld [vmem:[%s236 + $0x48] sm:$0xff]
      %v247 = vld [vmem:[%s236 + $0x50] sm:$0xff]
      %v248 = vld [vmem:[%s236 + $0x58] sm:$0xff]
      %v249 = vld [vmem:[%s236 + $0x60] sm:$0xff]
      %v250 = vld [vmem:[%s236 + $0x68] sm:$0xff]
      %v251 = vld [vmem:[%s236 + $0x70] sm:$0xff]
      %v252 = vld [vmem:[%s236 + $0x78] sm:$0xff]
      %v254 = vsel %vm195, %v237, 0
      %v257 = vsel %vm195, %v238, 0
      %v260 = vsel %vm195, %v239, 0
      %v263 = vsel %vm195, %v240, 0
      %v266 = vsel %vm195, %v241, 0
      %v269 = vsel %vm195, %v242, 0
      %v272 = vsel %vm195, %v243, 0
      %v275 = vsel %vm195, %v244, 0
      %v278 = vsel %vm195, %v245, 0
      %v281 = vsel %vm195, %v246, 0
      %v284 = vsel %vm195, %v247, 0
      %v287 = vsel %vm195, %v248, 0
      %v290 = vsel %vm195, %v249, 0
      %v293 = vsel %vm195, %v250, 0
      %v296 = vsel %vm195, %v251, 0
      %v299 = vsel %vm195, %v252, 0
      %301 = vmatprep.subr.mxu0 0.0
      %302 = vmatpush1.msra.mxu0 %v221
      %303 = vmatprep.subr.mxu0 0.0
      %304 = vmatpush1.msra.mxu0 %v223
      %305 = vmatprep.subr.mxu0 0.0
      %306 = vmatpush1.msra.mxu0 %v225
      %307 = vmatprep.subr.mxu0 0.0
      %308 = vmatpush1.msra.mxu0 %v227
      %309 = vmatprep.subr.mxu0 0.0
      %310 = vmatpush1.msra.mxu0 %v229
      %311 = vmatprep.subr.mxu0 0.0
      %312 = vmatpush1.msra.mxu0 %v231
      %313 = vmatprep.subr.mxu0 0.0
      %314 = vmatpush1.msra.mxu0 %v233
      %315 = vmatprep.subr.mxu0 0.0
      %316 = vmatpush1.msra.mxu0 %v235
      %317 = vmatprep.subr.mxu0 0.0
      %318 = vmatpush1.msra.mxu0 0.0
      %319 = vmatprep.subr.mxu0 0.0
      %320 = vmatpush1.msra.mxu0 0.0
      %321 = vmatprep.subr.mxu0 0.0
      %322 = vmatpush1.msra.mxu0 0.0
      %323 = vmatprep.subr.mxu0 0.0
      %324 = vmatpush1.msra.mxu0 0.0
      %325 = vmatprep.subr.mxu0 0.0
      %326 = vmatpush1.msra.mxu0 0.0
      %327 = vmatprep.subr.mxu0 0.0
      %328 = vmatpush1.msra.mxu0 0.0
      %329 = vmatprep.subr.mxu0 0.0
      %330 = vmatpush1.msra.mxu0 0.0
      %331 = vmatprep.subr.mxu0 0.0
      %332 = vmatpush1.msra.mxu0 0.0
      %333 = vmatprep.subr.mxu0 0.0
      %334 = vmatpush1.msra.mxu0 0.0
      %335 = vmatprep.subr.mxu0 0.0
      %336 = vmatpush1.msra.mxu0 0.0
      %337 = vmatprep.subr.mxu0 0.0
      %338 = vmatpush1.msra.mxu0 0.0
      %339 = vmatprep.subr.mxu0 0.0
      %340 = vmatpush1.msra.mxu0 0.0
      %341 = vmatprep.subr.mxu0 0.0
      %342 = vmatpush1.msra.mxu0 0.0
      %343 = vmatprep.subr.mxu0 0.0
      %344 = vmatpush1.msra.mxu0 0.0
      %345 = vmatprep.subr.mxu0 0.0
      %346 = vmatpush1.msra.mxu0 0.0
      %347 = vmatprep.subr.mxu0 0.0
      %348 = vmatpush1.msra.mxu0 0.0
      %349 = vmatprep.subr.mxu0 0.0
      %350 = vmatpush1.msra.mxu0 0.0
      %351 = vmatprep.subr.mxu0 0.0
      %352 = vmatpush1.msra.mxu0 0.0
      %353 = vmatprep.subr.mxu0 0.0
      %354 = vmatpush1.msra.mxu0 0.0
      %355 = vmatprep.subr.mxu0 0.0
      %356 = vmatpush1.msra.mxu0 0.0
      %357 = vmatprep.subr.mxu0 0.0
      %358 = vmatpush1.msra.mxu0 0.0
      %359 = vmatprep.subr.mxu0 0.0
      %360 = vmatpush1.msra.mxu0 0.0
      %361 = vmatprep.subr.mxu0 0.0
      %362 = vmatpush1.msra.mxu0 0.0
      %363 = vmatprep.subr.mxu0 0.0
      %364 = vmatpush1.msra.mxu0 0.0
      %365 = vmatprep.mubr.f32.mxu0 0.0
      %366 = vmatmul.mubr.f32.gmra.mrb[0].mxu0 %v254
      %v367 = vpop.f32.mrb[0].mxu0
      %v368 = vadd.f32 0.0, %v367
      %v369 = vpop.f32.mrb[0].mxu0
      %370 = vmatprep.mubr.f32.mxu0 0.0
      %371 = vmatmul.mubr.f32.gmra.mrb[0].mxu0 %v257
      %v372 = vpop.f32.mrb[0].mxu0
      %v373 = vadd.f32 0.0, %v372
      %v374 = vpop.f32.mrb[0].mxu0
      %375 = vmatprep.mubr.f32.mxu0 0.0
      %376 = vmatmul.mubr.f32.gmra.mrb[0].mxu0 %v260
      %v377 = vpop.f32.mrb[0].mxu0
      %v378 = vadd.f32 0.0, %v377
      %v379 = vpop.f32.mrb[0].mxu0
      %380 = vmatprep.mubr.f32.mxu0 0.0
      %381 = vmatmul.mubr.f32.gmra.mrb[0].mxu0 %v263
      %v382 = vpop.f32.mrb[0].mxu0
      %v383 = vadd.f32 0.0, %v382
      %v384 = vpop.f32.mrb[0].mxu0
      %385 = vmatprep.mubr.f32.mxu0 0.0
      %386 = vmatmul.mubr.f32.gmra.mrb[0].mxu0 %v266
      %v387 = vpop.f32.mrb[0].mxu0
      %v388 = vadd.f32 0.0, %v387
      %v389 = vpop.f32.mrb[0].mxu0
      %390 = vmatprep.mubr.f32.mxu0 0.0
      %391 = vmatmul.mubr.f32.gmra.mrb[0].mxu0 %v269
      %v392 = vpop.f32.mrb[0].mxu0
      %v393 = vadd.f32 0.0, %v392
      %v394 = vpop.f32.mrb[0].mxu0
      %395 = vmatprep.mubr.f32.mxu0 0.0
      %396 = vmatmul.mubr.f32.gmra.mrb[0].mxu0 %v272
      %v397 = vpop.f32.mrb[0].mxu0
      %v398 = vadd.f32 0.0, %v397
      %v399 = vpop.f32.mrb[0].mxu0
      %400 = vmatprep.mubr.f32.mxu0 0.0
      %401 = vmatmul.mubr.f32.gmra.mrb[0].mxu0 %v275
      %v402 = vpop.f32.mrb[0].mxu0
      %v403 = vadd.f32 0.0, %v402
      %v404 = vpop.f32.mrb[0].mxu0
      %405 = vmatprep.mubr.f32.mxu0 0.0
      %406 = vmatmul.mubr.f32.gmra.mrb[0].mxu0 %v278
      %v407 = vpop.f32.mrb[0].mxu0
      %v408 = vadd.f32 0.0, %v407
      %v409 = vpop.f32.mrb[0].mxu0
      %410 = vmatprep.mubr.f32.mxu0 0.0
      %411 = vmatmul.mubr.f32.gmra.mrb[0].mxu0 %v281
      %v412 = vpop.f32.mrb[0].mxu0
      %v413 = vadd.f32 0.0, %v412
      %v414 = vpop.f32.mrb[0].mxu0
      %415 = vmatprep.mubr.f32.mxu0 0.0
      %416 = vmatmul.mubr.f32.gmra.mrb[0].mxu0 %v284
      %v417 = vpop.f32.mrb[0].mxu0
      %v418 = vadd.f32 0.0, %v417
      %v419 = vpop.f32.mrb[0].mxu0
      %420 = vmatprep.mubr.f32.mxu0 0.0
      %421 = vmatmul.mubr.f32.gmra.mrb[0].mxu0 %v287
      %v422 = vpop.f32.mrb[0].mxu0
      %v423 = vadd.f32 0.0, %v422
      %v424 = vpop.f32.mrb[0].mxu0
      %425 = vmatprep.mubr.f32.mxu0 0.0
      %426 = vmatmul.mubr.f32.gmra.mrb[0].mxu0 %v290
      %v427 = vpop.f32.mrb[0].mxu0
      %v428 = vadd.f32 0.0, %v427
      %v429 = vpop.f32.mrb[0].mxu0
      %430 = vmatprep.mubr.f32.mxu0 0.0
      %431 = vmatmul.mubr.f32.gmra.mrb[0].mxu0 %v293
      %v432 = vpop.f32.mrb[0].mxu0
      %v433 = vadd.f32 0.0, %v432
      %v434 = vpop.f32.mrb[0].mxu0
      %435 = vmatprep.mubr.f32.mxu0 0.0
      %436 = vmatmul.mubr.f32.gmra.mrb[0].mxu0 %v296
      %v437 = vpop.f32.mrb[0].mxu0
      %v438 = vadd.f32 0.0, %v437
      %v439 = vpop.f32.mrb[0].mxu0
      %440 = vmatprep.mubr.f32.mxu0 0.0
      %441 = vmatmul.mubr.f32.gmra.mrb[0].mxu0 %v299
      %v442 = vpop.f32.mrb[0].mxu0
      %v443 = vadd.f32 0.0, %v442
      %v444 = vpop.f32.mrb[0].mxu0
      %445 = vdwg.mxu0
      %v447 = vsel %vm195, %v204, 0
      %v450 = vsel %vm195, %v205, 0
      %v453 = vsel %vm195, %v206, 0
      %v456 = vsel %vm195, %v207, 0
      %v459 = vsel %vm195, %v208, 0
      %v462 = vsel %vm195, %v209, 0
      %v465 = vsel %vm195, %v210, 0
      %v468 = vsel %vm195, %v211, 0
      %v471 = vsel %vm195, %v212, 0
      %v474 = vsel %vm195, %v213, 0
      %v477 = vsel %vm195, %v214, 0
      %v480 = vsel %vm195, %v215, 0
      %v483 = vsel %vm195, %v216, 0
      %v486 = vsel %vm195, %v217, 0
      %v489 = vsel %vm195, %v218, 0
      %v492 = vsel %vm195, %v219, 0
      %494 = vmatprep.subr.mxu0 0.0
      %495 = vmatpush1.msra.mxu0 %v196
      %496 = vmatprep.subr.mxu0 0.0
      %497 = vmatpush1.msra.mxu0 %v197
      %498 = vmatprep.subr.mxu0 0.0
      %499 = vmatpush1.msra.mxu0 %v198
      %500 = vmatprep.subr.mxu0 0.0
      %501 = vmatpush1.msra.mxu0 %v199
      %502 = vmatprep.subr.mxu0 0.0
      %503 = vmatpush1.msra.mxu0 %v200
      %504 = vmatprep.subr.mxu0 0.0
      %505 = vmatpush1.msra.mxu0 %v201
      %506 = vmatprep.subr.mxu0 0.0
      %507 = vmatpush1.msra.mxu0 %v202
      %508 = vmatprep.subr.mxu0 0.0
      %509 = vmatpush1.msra.mxu0 %v203
      %510 = vmatprep.subr.mxu0 0.0
      %511 = vmatpush1.msra.mxu0 0.0
      %512 = vmatprep.subr.mxu0 0.0
      %513 = vmatpush1.msra.mxu0 0.0
      %514 = vmatprep.subr.mxu0 0.0
      %515 = vmatpush1.msra.mxu0 0.0
      %516 = vmatprep.subr.mxu0 0.0
      %517 = vmatpush1.msra.mxu0 0.0
      %518 = vmatprep.subr.mxu0 0.0
      %519 = vmatpush1.msra.mxu0 0.0
      %520 = vmatprep.subr.mxu0 0.0
      %521 = vmatpush1.msra.mxu0 0.0
      %522 = vmatprep.subr.mxu0 0.0
      %523 = vmatpush1.msra.mxu0 0.0
      %524 = vmatprep.subr.mxu0 0.0
      %525 = vmatpush1.msra.mxu0 0.0
      %526 = vmatprep.subr.mxu0 0.0
      %527 = vmatpush1.msra.mxu0 0.0
      %528 = vmatprep.subr.mxu0 0.0
      %529 = vmatpush1.msra.mxu0 0.0
      %530 = vmatprep.subr.mxu0 0.0
      %531 = vmatpush1.msra.mxu0 0.0
      %532 = vmatprep.subr.mxu0 0.0
      %533 = vmatpush1.msra.mxu0 0.0
      %534 = vmatprep.subr.mxu0 0.0
      %535 = vmatpush1.msra.mxu0 0.0
      %536 = vmatprep.subr.mxu0 0.0
      %537 = vmatpush1.msra.mxu0 0.0
      %538 = vmatprep.subr.mxu0 0.0
      %539 = vmatpush1.msra.mxu0 0.0
      %540 = vmatprep.subr.mxu0 0.0
      %541 = vmatpush1.msra.mxu0 0.0
      %542 = vmatprep.subr.mxu0 0.0
      %543 = vmatpush1.msra.mxu0 0.0
      %544 = vmatprep.subr.mxu0 0.0
      %545 = vmatpush1.msra.mxu0 0.0
      %546 = vmatprep.subr.mxu0 0.0
      %547 = vmatpush1.msra.mxu0 0.0
      %548 = vmatprep.subr.mxu0 0.0
      %549 = vmatpush1.msra.mxu0 0.0
      %550 = vmatprep.subr.mxu0 0.0
      %551 = vmatpush1.msra.mxu0 0.0
      %552 = vmatprep.subr.mxu0 0.0
      %553 = vmatpush1.msra.mxu0 0.0
      %554 = vmatprep.subr.mxu0 0.0
      %555 = vmatpush1.msra.mxu0 0.0
      %556 = vmatprep.subr.mxu0 0.0
      %557 = vmatpush1.msra.mxu0 0.0
      %558 = vmatprep.mubr.f32.mxu0 0.0
      %559 = vmatmul.mubr.f32.gmra.mrb[0].mxu0 %v447
      %v560 = vpop.f32.mrb[0].mxu0
      %v561 = vadd.f32 %v368, %v560
      %v562 = vpop.f32.mrb[0].mxu0
      %563 = vmatprep.mubr.f32.mxu0 0.0
      %564 = vmatmul.mubr.f32.gmra.mrb[0].mxu0 %v450
      %v565 = vpop.f32.mrb[0].mxu0
      %v566 = vadd.f32 %v373, %v565
      %v567 = vpop.f32.mrb[0].mxu0
      %568 = vmatprep.mubr.f32.mxu0 0.0
      %569 = vmatmul.mubr.f32.gmra.mrb[0].mxu0 %v453
      %v570 = vpop.f32.mrb[0].mxu0
      %v571 = vadd.f32 %v378, %v570
      %v572 = vpop.f32.mrb[0].mxu0
      %573 = vmatprep.mubr.f32.mxu0 0.0
      %574 = vmatmul.mubr.f32.gmra.mrb[0].mxu0 %v456
      %v575 = vpop.f32.mrb[0].mxu0
      %v576 = vadd.f32 %v383, %v575
      %v577 = vpop.f32.mrb[0].mxu0
      %578 = vmatprep.mubr.f32.mxu0 0.0
      %579 = vmatmul.mubr.f32.gmra.mrb[0].mxu0 %v459
      %v580 = vpop.f32.mrb[0].mxu0
      %v581 = vadd.f32 %v388, %v580
      %v582 = vpop.f32.mrb[0].mxu0
      %583 = vmatprep.mubr.f32.mxu0 0.0
      %584 = vmatmul.mubr.f32.gmra.mrb[0].mxu0 %v462
      %v585 = vpop.f32.mrb[0].mxu0
      %v586 = vadd.f32 %v393, %v585
      %v587 = vpop.f32.mrb[0].mxu0
      %588 = vmatprep.mubr.f32.mxu0 0.0
      %589 = vmatmul.mubr.f32.gmra.mrb[0].mxu0 %v465
      %v590 = vpop.f32.mrb[0].mxu0
      %v591 = vadd.f32 %v398, %v590
      %v592 = vpop.f32.mrb[0].mxu0
      %593 = vmatprep.mubr.f32.mxu0 0.0
      %594 = vmatmul.mubr.f32.gmra.mrb[0].mxu0 %v468
      %v595 = vpop.f32.mrb[0].mxu0
      %v596 = vadd.f32 %v403, %v595
      %v597 = vpop.f32.mrb[0].mxu0
      %598 = vmatprep.mubr.f32.mxu0 0.0
      %599 = vmatmul.mubr.f32.gmra.mrb[0].mxu0 %v471
      %v600 = vpop.f32.mrb[0].mxu0
      %v601 = vadd.f32 %v408, %v600
      %v602 = vpop.f32.mrb[0].mxu0
      %603 = vmatprep.mubr.f32.mxu0 0.0
      %604 = vmatmul.mubr.f32.gmra.mrb[0].mxu0 %v474
      %v605 = vpop.f32.mrb[0].mxu0
      %v606 = vadd.f32 %v413, %v605
      %v607 = vpop.f32.mrb[0].mxu0
      %608 = vmatprep.mubr.f32.mxu0 0.0
      %609 = vmatmul.mubr.f32.gmra.mrb[0].mxu0 %v477
      %v610 = vpop.f32.mrb[0].mxu0
      %v611 = vadd.f32 %v418, %v610
      %v612 = vpop.f32.mrb[0].mxu0
      %613 = vmatprep.mubr.f32.mxu0 0.0
      %614 = vmatmul.mubr.f32.gmra.mrb[0].mxu0 %v480
      %v615 = vpop.f32.mrb[0].mxu0
      %v616 = vadd.f32 %v423, %v615
      %v617 = vpop.f32.mrb[0].mxu0
      %618 = vmatprep.mubr.f32.mxu0 0.0
      %619 = vmatmul.mubr.f32.gmra.mrb[0].mxu0 %v483
      %v620 = vpop.f32.mrb[0].mxu0
      %v621 = vadd.f32 %v428, %v620
      %v622 = vpop.f32.mrb[0].mxu0
      %623 = vmatprep.mubr.f32.mxu0 0.0
      %624 = vmatmul.mubr.f32.gmra.mrb[0].mxu0 %v486
      %v625 = vpop.f32.mrb[0].mxu0
      %v626 = vadd.f32 %v433, %v625
      %v627 = vpop.f32.mrb[0].mxu0
      %628 = vmatprep.mubr.f32.mxu0 0.0
      %629 = vmatmul.mubr.f32.gmra.mrb[0].mxu0 %v489
      %v630 = vpop.f32.mrb[0].mxu0
      %v631 = vadd.f32 %v438, %v630
      %v632 = vpop.f32.mrb[0].mxu0
      %633 = vmatprep.mubr.f32.mxu0 0.0
      %634 = vmatmul.mubr.f32.gmra.mrb[0].mxu0 %v492
      %v635 = vpop.f32.mrb[0].mxu0
      %v636 = vadd.f32 %v443, %v635
      %v637 = vpop.f32.mrb[0].mxu0
      %638 = vdwg.mxu0
      %639 = vrot.lane.b32.xlu0 %v196, 126
      %v640 = vpop.permute.xlu0 %639
      %641 = vrot.lane.b32.xlu0 %v197, 126
      %v642 = vpop.permute.xlu0 %641
      %643 = vrot.lane.b32.xlu0 %v198, 126
      %v644 = vpop.permute.xlu0 %643
      %645 = vrot.lane.b32.xlu0 %v199, 126
      %v646 = vpop.permute.xlu0 %645
      %647 = vrot.lane.b32.xlu0 %v200, 126
      %v648 = vpop.permute.xlu0 %647
      %649 = vrot.lane.b32.xlu0 %v201, 126
      %v650 = vpop.permute.xlu0 %649
      %651 = vrot.lane.b32.xlu0 %v202, 126
      %v652 = vpop.permute.xlu0 %651
      %653 = vrot.lane.b32.xlu0 %v203, 126
      %v654 = vpop.permute.xlu0 %653
      %s655 = scalar_lea.vmem %s1, 256
      %v656 = vld [vmem:[%s655] sm:$0xff]
      %v657 = vld [vmem:[%s655 + $0x8] sm:$0xff]
      %v658 = vld [vmem:[%s655 + $0x10] sm:$0xff]
      %v659 = vld [vmem:[%s655 + $0x18] sm:$0xff]
      %v660 = vld [vmem:[%s655 + $0x20] sm:$0xff]
      %v661 = vld [vmem:[%s655 + $0x28] sm:$0xff]
      %v662 = vld [vmem:[%s655 + $0x30] sm:$0xff]
      %v663 = vld [vmem:[%s655 + $0x38] sm:$0xff]
      %v664 = vld [vmem:[%s655 + $0x40] sm:$0xff]
      %v665 = vld [vmem:[%s655 + $0x48] sm:$0xff]
      %v666 = vld [vmem:[%s655 + $0x50] sm:$0xff]
      %v667 = vld [vmem:[%s655 + $0x58] sm:$0xff]
      %v668 = vld [vmem:[%s655 + $0x60] sm:$0xff]
      %v669 = vld [vmem:[%s655 + $0x68] sm:$0xff]
      %v670 = vld [vmem:[%s655 + $0x70] sm:$0xff]
      %v671 = vld [vmem:[%s655 + $0x78] sm:$0xff]
      %v673 = vsel %vm195, %v656, 0
      %v676 = vsel %vm195, %v657, 0
      %v679 = vsel %vm195, %v658, 0
      %v682 = vsel %vm195, %v659, 0
      %v685 = vsel %vm195, %v660, 0
      %v688 = vsel %vm195, %v661, 0
      %v691 = vsel %vm195, %v662, 0
      %v694 = vsel %vm195, %v663, 0
      %v697 = vsel %vm195, %v664, 0
      %v700 = vsel %vm195, %v665, 0
      %v703 = vsel %vm195, %v666, 0
      %v706 = vsel %vm195, %v667, 0
      %v709 = vsel %vm195, %v668, 0
      %v712 = vsel %vm195, %v669, 0
      %v715 = vsel %vm195, %v670, 0
      %v718 = vsel %vm195, %v671, 0
      %720 = vmatprep.subr.mxu0 0.0
      %721 = vmatpush1.msra.mxu0 %v640
      %722 = vmatprep.subr.mxu0 0.0
      %723 = vmatpush1.msra.mxu0 %v642
      %724 = vmatprep.subr.mxu0 0.0
      %725 = vmatpush1.msra.mxu0 %v644
      %726 = vmatprep.subr.mxu0 0.0
      %727 = vmatpush1.msra.mxu0 %v646
      %728 = vmatprep.subr.mxu0 0.0
      %729 = vmatpush1.msra.mxu0 %v648
      %730 = vmatprep.subr.mxu0 0.0
      %731 = vmatpush1.msra.mxu0 %v650
      %732 = vmatprep.subr.mxu0 0.0
      %733 = vmatpush1.msra.mxu0 %v652
      %734 = vmatprep.subr.mxu0 0.0
      %735 = vmatpush1.msra.mxu0 %v654
      %736 = vmatprep.subr.mxu0 0.0
      %737 = vmatpush1.msra.mxu0 0.0
      %738 = vmatprep.subr.mxu0 0.0
      %739 = vmatpush1.msra.mxu0 0.0
      %740 = vmatprep.subr.mxu0 0.0
      %741 = vmatpush1.msra.mxu0 0.0
      %742 = vmatprep.subr.mxu0 0.0
      %743 = vmatpush1.msra.mxu0 0.0
      %744 = vmatprep.subr.mxu0 0.0
      %745 = vmatpush1.msra.mxu0 0.0
      %746 = vmatprep.subr.mxu0 0.0
      %747 = vmatpush1.msra.mxu0 0.0
      %748 = vmatprep.subr.mxu0 0.0
      %749 = vmatpush1.msra.mxu0 0.0
      %750 = vmatprep.subr.mxu0 0.0
      %751 = vmatpush1.msra.mxu0 0.0
      %752 = vmatprep.subr.mxu0 0.0
      %753 = vmatpush1.msra.mxu0 0.0
      %754 = vmatprep.subr.mxu0 0.0
      %755 = vmatpush1.msra.mxu0 0.0
      %756 = vmatprep.subr.mxu0 0.0
      %757 = vmatpush1.msra.mxu0 0.0
      %758 = vmatprep.subr.mxu0 0.0
      %759 = vmatpush1.msra.mxu0 0.0
      %760 = vmatprep.subr.mxu0 0.0
      %761 = vmatpush1.msra.mxu0 0.0
      %762 = vmatprep.subr.mxu0 0.0
      %763 = vmatpush1.msra.mxu0 0.0
      %764 = vmatprep.subr.mxu0 0.0
      %765 = vmatpush1.msra.mxu0 0.0
      %766 = vmatprep.subr.mxu0 0.0
      %767 = vmatpush1.msra.mxu0 0.0
      %768 = vmatprep.subr.mxu0 0.0
      %769 = vmatpush1.msra.mxu0 0.0
      %770 = vmatprep.subr.mxu0 0.0
      %771 = vmatpush1.msra.mxu0 0.0
      %772 = vmatprep.subr.mxu0 0.0
      %773 = vmatpush1.msra.mxu0 0.0
      %774 = vmatprep.subr.mxu0 0.0
      %775 = vmatpush1.msra.mxu0 0.0
      %776 = vmatprep.subr.mxu0 0.0
      %777 = vmatpush1.msra.mxu0 0.0
      %778 = vmatprep.subr.mxu0 0.0
      %779 = vmatpush1.msra.mxu0 0.0
      %780 = vmatprep.subr.mxu0 0.0
      %781 = vmatpush1.msra.mxu0 0.0
      %782 = vmatprep.subr.mxu0 0.0
      %783 = vmatpush1.msra.mxu0 0.0
      %784 = vmatprep.mubr.f32.mxu0 0.0
      %785 = vmatmul.mubr.f32.gmra.mrb[0].mxu0 %v673
      %v786 = vpop.f32.mrb[0].mxu0
      %v787 = vadd.f32 0.0, %v786
      %v788 = vpop.f32.mrb[0].mxu0
      %789 = vmatprep.mubr.f32.mxu0 0.0
      %790 = vmatmul.mubr.f32.gmra.mrb[0].mxu0 %v676
      %v791 = vpop.f32.mrb[0].mxu0
      %v792 = vadd.f32 0.0, %v791
      %v793 = vpop.f32.mrb[0].mxu0
      %794 = vmatprep.mubr.f32.mxu0 0.0
      %795 = vmatmul.mubr.f32.gmra.mrb[0].mxu0 %v679
      %v796 = vpop.f32.mrb[0].mxu0
      %v797 = vadd.f32 0.0, %v796
      %v798 = vpop.f32.mrb[0].mxu0
      %799 = vmatprep.mubr.f32.mxu0 0.0
      %800 = vmatmul.mubr.f32.gmra.mrb[0].mxu0 %v682
      %v801 = vpop.f32.mrb[0].mxu0
      %v802 = vadd.f32 0.0, %v801
      %v803 = vpop.f32.mrb[0].mxu0
      %804 = vmatprep.mubr.f32.mxu0 0.0
      %805 = vmatmul.mubr.f32.gmra.mrb[0].mxu0 %v685
      %v806 = vpop.f32.mrb[0].mxu0
      %v807 = vadd.f32 0.0, %v806
      %v808 = vpop.f32.mrb[0].mxu0
      %809 = vmatprep.mubr.f32.mxu0 0.0
      %810 = vmatmul.mubr.f32.gmra.mrb[0].mxu0 %v688
      %v811 = vpop.f32.mrb[0].mxu0
      %v812 = vadd.f32 0.0, %v811
      %v813 = vpop.f32.mrb[0].mxu0
      %814 = vmatprep.mubr.f32.mxu0 0.0
      %815 = vmatmul.mubr.f32.gmra.mrb[0].mxu0 %v691
      %v816 = vpop.f32.mrb[0].mxu0
      %v817 = vadd.f32 0.0, %v816
      %v818 = vpop.f32.mrb[0].mxu0
      %819 = vmatprep.mubr.f32.mxu0 0.0
      %820 = vmatmul.mubr.f32.gmra.mrb[0].mxu0 %v694
      %v821 = vpop.f32.mrb[0].mxu0
      %v822 = vadd.f32 0.0, %v821
      %v823 = vpop.f32.mrb[0].mxu0
      %824 = vmatprep.mubr.f32.mxu0 0.0
      %825 = vmatmul.mubr.f32.gmra.mrb[0].mxu0 %v697
      %v826 = vpop.f32.mrb[0].mxu0
      %v827 = vadd.f32 0.0, %v826
      %v828 = vpop.f32.mrb[0].mxu0
      %829 = vmatprep.mubr.f32.mxu0 0.0
      %830 = vmatmul.mubr.f32.gmra.mrb[0].mxu0 %v700
      %v831 = vpop.f32.mrb[0].mxu0
      %v832 = vadd.f32 0.0, %v831
      %v833 = vpop.f32.mrb[0].mxu0
      %834 = vmatprep.mubr.f32.mxu0 0.0
      %835 = vmatmul.mubr.f32.gmra.mrb[0].mxu0 %v703
      %v836 = vpop.f32.mrb[0].mxu0
      %v837 = vadd.f32 0.0, %v836
      %v838 = vpop.f32.mrb[0].mxu0
      %839 = vmatprep.mubr.f32.mxu0 0.0
      %840 = vmatmul.mubr.f32.gmra.mrb[0].mxu0 %v706
      %v841 = vpop.f32.mrb[0].mxu0
      %v842 = vadd.f32 0.0, %v841
      %v843 = vpop.f32.mrb[0].mxu0
      %844 = vmatprep.mubr.f32.mxu0 0.0
      %845 = vmatmul.mubr.f32.gmra.mrb[0].mxu0 %v709
      %v846 = vpop.f32.mrb[0].mxu0
      %v847 = vadd.f32 0.0, %v846
      %v848 = vpop.f32.mrb[0].mxu0
      %849 = vmatprep.mubr.f32.mxu0 0.0
      %850 = vmatmul.mubr.f32.gmra.mrb[0].mxu0 %v712
      %v851 = vpop.f32.mrb[0].mxu0
      %v852 = vadd.f32 0.0, %v851
      %v853 = vpop.f32.mrb[0].mxu0
      %854 = vmatprep.mubr.f32.mxu0 0.0
      %855 = vmatmul.mubr.f32.gmra.mrb[0].mxu0 %v715
      %v856 = vpop.f32.mrb[0].mxu0
      %v857 = vadd.f32 0.0, %v856
      %v858 = vpop.f32.mrb[0].mxu0
      %859 = vmatprep.mubr.f32.mxu0 0.0
      %860 = vmatmul.mubr.f32.gmra.mrb[0].mxu0 %v718
      %v861 = vpop.f32.mrb[0].mxu0
      %v862 = vadd.f32 0.0, %v861
      %v863 = vpop.f32.mrb[0].mxu0
      %864 = vdwg.mxu0
      %v865 = vadd.f32 %v561, %v787
      %v866 = vadd.f32 %v566, %v792
      %v867 = vadd.f32 %v571, %v797
      %v868 = vadd.f32 %v576, %v802
      %v869 = vadd.f32 %v581, %v807
      %v870 = vadd.f32 %v586, %v812
      %v871 = vadd.f32 %v591, %v817
      %v872 = vadd.f32 %v596, %v822
      %v873 = vadd.f32 %v601, %v827
      %v874 = vadd.f32 %v606, %v832
      %v875 = vadd.f32 %v611, %v837
      %v876 = vadd.f32 %v616, %v842
      %v877 = vadd.f32 %v621, %v847
      %v878 = vadd.f32 %v626, %v852
      %v879 = vadd.f32 %v631, %v857
      %v880 = vadd.f32 %v636, %v862
      %882 = vset.pattern.permute.xlu0 0
      %883 = vperm.xlu0 %882, %v171
      %v884 = vpop.permute.xlu0 %883
      %887 = vset.pattern.permute.xlu0 0
      %888 = vperm.xlu0 %887, %v172
      %v889 = vpop.permute.xlu0 %888
      %892 = vset.pattern.permute.xlu0 0
      %893 = vperm.xlu0 %892, %v173
      %v894 = vpop.permute.xlu0 %893
      %897 = vset.pattern.permute.xlu0 0
      %898 = vperm.xlu0 %897, %v174
      %v899 = vpop.permute.xlu0 %898
      %902 = vset.pattern.permute.xlu0 0
      %903 = vperm.xlu0 %902, %v175
      %v904 = vpop.permute.xlu0 %903
      %907 = vset.pattern.permute.xlu0 0
      %908 = vperm.xlu0 %907, %v176
      %v909 = vpop.permute.xlu0 %908
      %912 = vset.pattern.permute.xlu0 0
      %913 = vperm.xlu0 %912, %v177
      %v914 = vpop.permute.xlu0 %913
      %917 = vset.pattern.permute.xlu0 0
      %918 = vperm.xlu0 %917, %v178
      %v919 = vpop.permute.xlu0 %918
      %922 = vset.pattern.permute.xlu0 0
      %923 = vperm.xlu0 %922, %v179
      %v924 = vpop.permute.xlu0 %923
      %927 = vset.pattern.permute.xlu0 0
      %928 = vperm.xlu0 %927, %v180
      %v929 = vpop.permute.xlu0 %928
      %932 = vset.pattern.permute.xlu0 0
      %933 = vperm.xlu0 %932, %v181
      %v934 = vpop.permute.xlu0 %933
      %937 = vset.pattern.permute.xlu0 0
      %938 = vperm.xlu0 %937, %v182
      %v939 = vpop.permute.xlu0 %938
      %942 = vset.pattern.permute.xlu0 0
      %943 = vperm.xlu0 %942, %v183
      %v944 = vpop.permute.xlu0 %943
      %947 = vset.pattern.permute.xlu0 0
      %948 = vperm.xlu0 %947, %v184
      %v949 = vpop.permute.xlu0 %948
      %952 = vset.pattern.permute.xlu0 0
      %953 = vperm.xlu0 %952, %v185
      %v954 = vpop.permute.xlu0 %953
      %957 = vset.pattern.permute.xlu0 0
      %958 = vperm.xlu0 %957, %v186
      %v959 = vpop.permute.xlu0 %958
      %v961 = vadd.f32 %v865, %v884
      %v962 = vadd.f32 %v866, %v889
      %v963 = vadd.f32 %v867, %v894
      %v964 = vadd.f32 %v868, %v899
      %v965 = vadd.f32 %v869, %v904
      %v966 = vadd.f32 %v870, %v909
      %v967 = vadd.f32 %v871, %v914
      %v968 = vadd.f32 %v872, %v919
      %v969 = vadd.f32 %v873, %v924
      %v970 = vadd.f32 %v874, %v929
      %v971 = vadd.f32 %v875, %v934
      %v972 = vadd.f32 %v876, %v939
      %v973 = vadd.f32 %v877, %v944
      %v974 = vadd.f32 %v878, %v949
      %v975 = vadd.f32 %v879, %v954
      %v976 = vadd.f32 %v880, %v959
      %v977 = vmax.f32 %v961, 0.0
      %v978 = vmax.f32 %v962, 0.0
      %v979 = vmax.f32 %v963, 0.0
      %v980 = vmax.f32 %v964, 0.0
      %v981 = vmax.f32 %v965, 0.0
      %v982 = vmax.f32 %v966, 0.0
      %v983 = vmax.f32 %v967, 0.0
      %v984 = vmax.f32 %v968, 0.0
      %v985 = vmax.f32 %v969, 0.0
      %v986 = vmax.f32 %v970, 0.0
      %v987 = vmax.f32 %v971, 0.0
      %v988 = vmax.f32 %v972, 0.0
      %v989 = vmax.f32 %v973, 0.0
      %v990 = vmax.f32 %v974, 0.0
      %v991 = vmax.f32 %v975, 0.0
      %v992 = vmax.f32 %v976, 0.0
      %vm993 = vcmask 506880
      %994 = vst.msk [vmem:[%s170] sm:$0xff] %vm993, %v977
      %995 = vst.msk [vmem:[%s170 + $0x8] sm:$0xff] %vm993, %v978
      %996 = vst.msk [vmem:[%s170 + $0x10] sm:$0xff] %vm993, %v979
      %997 = vst.msk [vmem:[%s170 + $0x18] sm:$0xff] %vm993, %v980
      %998 = vst.msk [vmem:[%s170 + $0x20] sm:$0xff] %vm993, %v981
      %999 = vst.msk [vmem:[%s170 + $0x28] sm:$0xff] %vm993, %v982
      %1000 = vst.msk [vmem:[%s170 + $0x30] sm:$0xff] %vm993, %v983
      %1001 = vst.msk [vmem:[%s170 + $0x38] sm:$0xff] %vm993, %v984
      %1002 = vst.msk [vmem:[%s170 + $0x40] sm:$0xff] %vm993, %v985
      %1003 = vst.msk [vmem:[%s170 + $0x48] sm:$0xff] %vm993, %v986
      %1004 = vst.msk [vmem:[%s170 + $0x50] sm:$0xff] %vm993, %v987
      %1005 = vst.msk [vmem:[%s170 + $0x58] sm:$0xff] %vm993, %v988
      %1006 = vst.msk [vmem:[%s170 + $0x60] sm:$0xff] %vm993, %v989
      %1007 = vst.msk [vmem:[%s170 + $0x68] sm:$0xff] %vm993, %v990
      %1008 = vst.msk [vmem:[%s170 + $0x70] sm:$0xff] %vm993, %v991
      %1009 = vst.msk [vmem:[%s170 + $0x78] sm:$0xff] %vm993, %v992
      %p1010 = scmp.lt.s32.totalorder %s14, 1
      %s1011 = scalar_select %p1010, %s14, 1
      %s1012 = smul.addr %s1011, 16
      %s1013 = smul.addr %s1012, 8
      %s1014 = scalar_lea.vmem %s3, %s1013
      // Predicated region
      $region33: #{basic_conv1d_forward.1} parent=31 // pred_check
        %p1015 = pneg %p100
      $region34: #{basic_conv1d_forward.1} parent=31 // pred_check_branch
        %1017 = sbr.rel (%p1015) target = $region36
      $region35: #{basic_conv1d_forward.1} parent=31 // pred_region
        _
      $region36: #{basic_conv1d_forward.1} parent=31 // pred_fallthru
        _
    $region32: #{basic_conv1d_forward.1} parent=5 // pred_fallthru
      _
    %p1018 = scmp.le.s32.totalorder 2, %s9
    // Predicated region
    $region37: #{basic_conv1d_forward.1} parent=5 // pred_check
      %p1019 = pneg %p1018
    $region38: #{basic_conv1d_forward.1} parent=5 // pred_check_branch
      %1021 = sbr.rel (%p1019) target = $region40
    $region39: #{basic_conv1d_forward.1} parent=5 // pred_region
      %s1022 = ssub.s32 %s9, 2
      // Predicated region
      $region41: #{basic_conv1d_forward.1} parent=39 // pred_check
        %p1023 = pneg %p106
      $region42: #{basic_conv1d_forward.1} parent=39 // pred_check_branch
        %1025 = sbr.rel (%p1023) target = $region44
      $region43: #{basic_conv1d_forward.1} parent=39 // pred_region
        %p1026 = scmp.lt.s32.totalorder %s15, 1
        %s1027 = scalar_select %p1026, %s15, 1
        %s1028 = smul.addr %s1027, 16
        %s1029 = smul.addr %s1028, 8
        %s1030 = scalar_lea.vmem %s3, %s1029
      $region44: #{basic_conv1d_forward.1} parent=39 // pred_fallthru
        _
    $region40: #{basic_conv1d_forward.1} parent=5 // pred_fallthru
      _
  $region6: #{basic_conv1d_forward.1} parent=0 // loop_footer
    %s13 = sadd.s32 1, %s9
  $region7: #{basic_conv1d_forward.1} parent=0 // loop_footer_branch
    %8 = sbr.rel target = $region3
  $region8: #{basic_conv1d_forward.1} parent=0 // loop_exit
    _

</llo_original>
